<compile_context>
chip_gen: v7x
topology: tpu7x:2x2x1
jax: 0.10.0
libtpu: 0.0.40
codegen_flags: <defaults>
</compile_context>

<pallas_src>
import functools

import jax
import jax.numpy as jnp
from jax.experimental import pallas as pl
from jax.experimental.pallas import tpu as pltpu


def _round_up(x, m):
    return (x + m - 1) // m * m


def _vmem_capacity_bytes():
    try:
        return int(pltpu.get_tpu_info().vmem_capacity_bytes)
    except Exception:
        return 64 * 1024 * 1024  # conservative (v7x-sized) fallback


# ---------------------------------------------------------------------------
# Fused kernel: conv(3x3, s=2, p=1) as a few MXU matmuls over packed parity
# planes + bias + LeakyReLU + per-tile BN partial sums.
# ---------------------------------------------------------------------------
def _conv_lrelu_kernel(pk_ref, w_ref, b_ref, y_ref, s1_ref, s2_ref, *,
                       th, wo, kdim, taps, coutp, neg_slope):
    rows = th * wo
    acc = jnp.zeros((rows, coutp), jnp.float32)
    for m, (ra, cb, c0) in enumerate(taps):
        # Static slice of the halo tile: rows [ra, ra+th), cols [cb, cb+wo),
        # channels [c0, c0+kdim).  NOTE: the cb==1 slices and the (th,wo)->rows merge
        # are not always layout-preserving under bf16 sublane tiling and may cost a
        # VMEM copy; acceptable while the pass is HBM-write-bound (small/medium Cin).
        lhs = pk_ref[ra:ra + th, cb:cb + wo, c0:c0 + kdim].reshape(rows, kdim)
        acc = acc + jnp.dot(lhs, w_ref[m], preferred_element_type=jnp.float32)

    y = acc + b_ref[...]                      # conv bias, (1, coutp) broadcast
    y = jnp.where(y > 0, y, neg_slope * y)    # LeakyReLU (slope 0.01)

    # BatchNorm partial statistics in f32, computed BEFORE the bf16 downcast.
    s1_ref[...] = jnp.sum(y, axis=0, keepdims=True)
    s2_ref[...] = jnp.sum(y * y, axis=0, keepdims=True)

    y_ref[...] = y.astype(y_ref.dtype)        # bf16 intermediate: halves HBM writes


def _pick_row_tile(ho, wo, wh, c4, kdim, n_mm, coutp, batch, budget):
    """Largest divisor `th` of Ho whose full VMEM footprint fits the budget."""
    c4p = _round_up(c4, 128)

    def est(t):
        rows = t * wo
        plane = 2 * (t + 1) * _round_up(wh, 16) * c4p * 2           # 2 pipeline bufs, bf16
        wts = 2 * n_mm * _round_up(kdim, 16) * coutp * 2            # 2 pipeline bufs, bf16
        yout = 2 * _round_up(rows, 16) * coutp * 2                  # 2 pipeline bufs, bf16
        lhs = 2 * _round_up(rows, 16) * _round_up(kdim, 128) * 2    # live tap operands
        temps = 3 * _round_up(rows, 8) * coutp * 4                  # f32 acc + y + slack
        return plane + wts + yout + lhs + temps + (1 << 20)

    divs = [t for t in range(1, ho + 1) if ho % t == 0 and est(t) <= budget]
    if not divs:
        divs = [1]  # TODO(synk): also tile the Wo axis if a single output row overflows VMEM.
    # Prefer: total grid >= 2 blocks (keeps both v7x TensorCores fed), 8-aligned row
    # tiles (dense vst / packed MXU M), then the largest tile (amortize grid overhead).
    return max(divs, key=lambda t: (batch * (ho // t) >= 2, (t * wo) % 8 == 0, t))


@functools.partial(jax.jit, static_argnames=("is_bn", "eps", "neg_slope"))
def downsample(x, w, b, gamma, beta, *, is_bn=True, eps=1e-5, neg_slope=0.01):
    """x: (B, Cin, H, W) NCHW; w: (Cout, Cin, 3, 3); b/gamma/beta: (Cout,). Returns NCHW f32."""
    B, Cin, H, W = x.shape
    Cout = w.shape[0]
    Ho, Wo = (H - 1) // 2 + 1, (W - 1) // 2 + 1
    Hh, Wh = Ho + 1, Wo + 1
    Hp, Wp = 2 * Hh, 2 * Wh
    Coutp = _round_up(Cout, 128)
    M = B * Ho * Wo
    C4 = 4 * Cin

    # ---- pack the four stride-2 parity planes channel-wise (1x input traffic) ----
    # pk[b, r, c, (ph*2+pw)*Cin + ci] == x_pad[b, ci, 2r+ph, 2c+pw]
    xb = x.astype(jnp.bfloat16)
    xp = jnp.pad(xb, ((0, 0), (0, 0), (1, Hp - H - 1), (1, Wp - W - 1)))
    pk = xp.reshape(B, Cin, Hh, 2, Wh, 2).transpose(0, 2, 4, 3, 5, 1).reshape(B, Hh, Wh, C4)

    # ---- per-matmul weights ----
    use_packed = Cin < 128   # stack taps along K while the MXU K-dim is underfilled
    if use_packed:
        # 4 matmuls with K = 4*Cin; spatial offsets (a,b) in {0,1}^2, zero blocks for
        # the (dh,dw) taps that don't exist (dh=2a+ph, dw=2b+pw must be <= 2).
        kdim = C4
        offs = ((0, 0), (0, 1), (1, 0), (1, 1))
        wt = jnp.zeros((4, C4, Coutp), jnp.float32)
        for m, (a, bb) in enumerate(offs):
            for ph in range(2):
                for pw in range(2):
                    dh, dw = 2 * a + ph, 2 * bb + pw
                    if dh <= 2 and dw <= 2:
                        p = ph * 2 + pw
                        wt = wt.at[m, p * Cin:(p + 1) * Cin, :Cout].set(w[:, :, dh, dw].T)
        taps = tuple((a, bb, 0) for (a, bb) in offs)
    else:
        # 9 matmuls with K = Cin (K already fills the MXU; avoids padded-K waste).
        kdim = Cin
        wt = jnp.zeros((9, Cin, Coutp), jnp.float32)
        taps = []
        for dh in range(3):
            for dw in range(3):
                m = dh * 3 + dw
                wt = wt.at[m, :, :Cout].set(w[:, :, dh, dw].T)
                taps.append((dh // 2, dw // 2, ((dh % 2) * 2 + (dw % 2)) * Cin))
        taps = tuple(taps)
    n_mm = len(taps)
    wt = wt.astype(jnp.bfloat16)
    bp = jnp.pad(b, (0, Coutp - Cout)).astype(jnp.float32).reshape(1, Coutp)

    # ---- halo pre-tiling: tile ti needs packed-plane rows [ti*th, ti*th + th] ----
    cap = _vmem_capacity_bytes()
    budget = max(12 << 20, (cap * 3) // 8)          # ~24 MiB on v7x, ~48 MiB on v5e/v6e
    th = _pick_row_tile(Ho, Wo, Wh, C4, kdim, n_mm, Coutp, B, budget)
    n_rt = Ho // th
    tile_rows = th * Wo
    G = B * n_rt
    pk_t = jnp.stack([pk[:, t * th: t * th + th + 1] for t in range(n_rt)], axis=1)
    pk_t = pk_t.reshape(G, th + 1, Wh, C4)

    kernel = functools.partial(_conv_lrelu_kernel, th=th, wo=Wo, kdim=kdim,
                               taps=taps, coutp=Coutp, neg_slope=neg_slope)
    cost = pl.CostEstimate(
        flops=2 * M * n_mm * kdim * Coutp,
        transcendentals=0,
        bytes_accessed=(pk_t.size * 2 + wt.size * 2 + bp.size * 4
                        + M * Coutp * 2 + G * 2 * Coutp * 4))

    y2, s1, s2 = pl.pallas_call(
        kernel,
        grid=(G,),
        in_specs=[
            pl.BlockSpec((None, th + 1, Wh, C4), lambda g: (g, 0, 0, 0)),
            pl.BlockSpec((n_mm, kdim, Coutp), lambda g: (0, 0, 0)),
            pl.BlockSpec((1, Coutp), lambda g: (0, 0)),
        ],
        out_specs=[
            pl.BlockSpec((None, tile_rows, Coutp), lambda g: (g, 0, 0)),
            pl.BlockSpec((None, 1, Coutp), lambda g: (g, 0, 0)),
            pl.BlockSpec((None, 1, Coutp), lambda g: (g, 0, 0)),
        ],
        out_shape=[
            jax.ShapeDtypeStruct((G, tile_rows, Coutp), jnp.bfloat16),   # conv+LeakyReLU
            jax.ShapeDtypeStruct((G, 1, Coutp), jnp.float32),            # per-tile sum
            jax.ShapeDtypeStruct((G, 1, Coutp), jnp.float32),            # per-tile sumsq
        ],
        compiler_params=pltpu.CompilerParams(
            dimension_semantics=("parallel",),
            vmem_limit_bytes=min(cap // 2, 64 * 1024 * 1024)),
        cost_estimate=cost,
    )(pk_t, wt, bp)

    # ---- epilogue in plain JAX: XLA fuses slice + affine + NCHW transpose ----
    y4 = y2.reshape(B, n_rt, th, Wo, Coutp).reshape(B, Ho, Wo, Coutp)[..., :Cout]
    y4 = y4.astype(jnp.float32)
    if is_bn:
        # Chan-style parallel combine of per-tile (sum, sumsq): every tile has exactly
        # `tile_rows` elements, so the merge is exact and avoids a global E[y^2]-E[y]^2.
        s_t = s1[:, 0, :Cout]
        q_t = s2[:, 0, :Cout]
        nt = float(tile_rows)
        mean_t = s_t / nt
        m2_t = q_t - nt * mean_t * mean_t
        mean = jnp.sum(s_t, axis=0) / M
        m2 = jnp.sum(m2_t, axis=0) + nt * jnp.sum((mean_t - mean) ** 2, axis=0)
        var = jnp.maximum(m2 / M, 0.0)                      # biased var (training mode)
        scale = gamma.astype(jnp.float32) * jax.lax.rsqrt(var + eps)
        shift = beta.astype(jnp.float32) - mean * scale
        y4 = y4 * scale + shift
    return y4.transpose(0, 3, 1, 2)


def _reference(x, w, b, gamma, beta, *, is_bn=True, eps=1e-5, neg_slope=0.01):
    y = jax.lax.conv_general_dilated(
        x, w, window_strides=(2, 2), padding=((1, 1), (1, 1)),
        dimension_numbers=("NCHW", "OIHW", "NCHW"))
    y = y + b.reshape(1, -1, 1, 1)
    y = jnp.where(y > 0, y, neg_slope * y)
    if is_bn:
        mean = jnp.mean(y, axis=(0, 2, 3), keepdims=True)
        var = jnp.mean((y - mean) ** 2, axis=(0, 2, 3), keepdims=True)
        y = (y - mean) * jax.lax.rsqrt(var + eps) * gamma.reshape(1, -1, 1, 1) \
            + beta.reshape(1, -1, 1, 1)
    return y


if __name__ == "__main__":
    B, Cin, Cout, H, W = 2, 4, 8, 16, 16
    key = jax.random.PRNGKey(0)
    kx, kw, kb = jax.random.split(key, 3)

    x = jax.random.normal(kx, (B, Cin, H, W), dtype=jnp.float32)
    # Deterministic synthetic parameters (shapes per nn.Conv2d / nn.BatchNorm2d).
    w = jax.random.normal(kw, (Cout, Cin, 3, 3), dtype=jnp.float32) * 0.1
    b = jax.random.normal(kb, (Cout,), dtype=jnp.float32) * 0.1
    gamma = jnp.ones((Cout,), dtype=jnp.float32)
    beta = jnp.zeros((Cout,), dtype=jnp.float32)

    out = jax.block_until_ready(downsample(x, w, b, gamma, beta, is_bn=True))
    ref = _reference(x, w, b, gamma, beta, is_bn=True)
    assert out.shape == (B, Cout, H // 2, W // 2), out.shape
    # bf16 MXU operands + bf16 intermediate -> compare at bf16-appropriate tolerance.
    assert jnp.allclose(out, ref, rtol=3e-2, atol=3e-2), \
        float(jnp.max(jnp.abs(out - ref)))

    # Also exercise the is_bn=False path of the module.
    out2 = jax.block_until_ready(downsample(x, w, b, gamma, beta, is_bn=False))
    ref2 = _reference(x, w, b, gamma, beta, is_bn=False)
    assert jnp.allclose(out2, ref2, rtol=3e-2, atol=3e-2)

    # TODO(synk): BatchNorm2d running_mean/running_var momentum updates (stateful buffers)
    # are not produced; only the training-mode forward normalization is implemented.
    print("KERNEL_OK")
</pallas_src>

<mosaic_0001>
module attributes {stable_mosaic.version = 11 : i64} {
  func.func @_conv_lrelu_kernel(%arg0: i32, %arg1: memref<1x9x9x16xbf16, #tpu.memory_space<vmem>>, %arg2: memref<4x16x128xbf16, #tpu.memory_space<vmem>>, %arg3: memref<1x128xf32, #tpu.memory_space<vmem>>, %arg4: memref<1x64x128xbf16, #tpu.memory_space<vmem>>, %arg5: memref<1x1x128xf32, #tpu.memory_space<vmem>>, %arg6: memref<1x1x128xf32, #tpu.memory_space<vmem>>) attributes {dimension_semantics = [#tpu.dimension_semantics<parallel>], iteration_bounds = array<i64: 2>, scalar_prefetch = 0 : i64, scratch_operands = 0 : i64, tpu.core_type = #tpu.core_type<tc>, window_params = [{transform_indices = @transform_0, window_bounds = array<i64: 1, 9, 9, 16>}, {pipeline_mode = #tpu.pipeline_mode<synchronous>, transform_indices = @transform_1, window_bounds = array<i64: 4, 16, 128>}, {pipeline_mode = #tpu.pipeline_mode<synchronous>, transform_indices = @transform_2, window_bounds = array<i64: 1, 128>}, {transform_indices = @transform_3, window_bounds = array<i64: 1, 64, 128>}, {transform_indices = @transform_4, window_bounds = array<i64: 1, 1, 128>}, {transform_indices = @transform_5, window_bounds = array<i64: 1, 1, 128>}]} {
    %cst = arith.constant 0.000000e+00 : f32
    %0 = vector.broadcast %cst : f32 to vector<64x128xf32>
    %c0 = arith.constant 0 : index
    %c0_0 = arith.constant 0 : index
    %c0_1 = arith.constant 0 : index
    %c0_2 = arith.constant 0 : index
    %1 = vector.load %arg1[%c0, %c0_0, %c0_1, %c0_2] : memref<1x9x9x16xbf16, #tpu.memory_space<vmem>>, vector<1x8x8x16xbf16>
    %2 = vector.shape_cast %1 : vector<1x8x8x16xbf16> to vector<8x8x16xbf16>
    %3 = vector.shape_cast %2 : vector<8x8x16xbf16> to vector<64x16xbf16>
    %c0_3 = arith.constant 0 : index
    %c0_4 = arith.constant 0 : index
    %c0_5 = arith.constant 0 : index
    %4 = vector.load %arg2[%c0_3, %c0_4, %c0_5] : memref<4x16x128xbf16, #tpu.memory_space<vmem>>, vector<1x16x128xbf16>
    %5 = vector.shape_cast %4 : vector<1x16x128xbf16> to vector<16x128xbf16>
    %cst_6 = arith.constant dense<0.000000e+00> : vector<64x128xf32>
    %6 = tpu.matmul %3, %5, %cst_6 {dimension_numbers = #tpu.dot_dimension_numbers<[1], [0], [0], [1], [0, 0, 1, 1], [], []>} : vector<64x16xbf16>, vector<16x128xbf16>, vector<64x128xf32> -> vector<64x128xf32>
    %7 = arith.addf %0, %6 : vector<64x128xf32>
    %c0_7 = arith.constant 0 : index
    %c0_8 = arith.constant 0 : index
    %c1 = arith.constant 1 : index
    %c0_9 = arith.constant 0 : index
    %8 = vector.load %arg1[%c0_7, %c0_8, %c1, %c0_9] : memref<1x9x9x16xbf16, #tpu.memory_space<vmem>>, vector<1x8x8x16xbf16>
    %9 = vector.shape_cast %8 : vector<1x8x8x16xbf16> to vector<8x8x16xbf16>
    %10 = vector.shape_cast %9 : vector<8x8x16xbf16> to vector<64x16xbf16>
    %c1_10 = arith.constant 1 : index
    %c0_11 = arith.constant 0 : index
    %c0_12 = arith.constant 0 : index
    %11 = vector.load %arg2[%c1_10, %c0_11, %c0_12] : memref<4x16x128xbf16, #tpu.memory_space<vmem>>, vector<1x16x128xbf16>
    %12 = vector.shape_cast %11 : vector<1x16x128xbf16> to vector<16x128xbf16>
    %cst_13 = arith.constant dense<0.000000e+00> : vector<64x128xf32>
    %13 = tpu.matmul %10, %12, %cst_13 {dimension_numbers = #tpu.dot_dimension_numbers<[1], [0], [0], [1], [0, 0, 1, 1], [], []>} : vector<64x16xbf16>, vector<16x128xbf16>, vector<64x128xf32> -> vector<64x128xf32>
    %14 = arith.addf %7, %13 : vector<64x128xf32>
    %c0_14 = arith.constant 0 : index
    %c1_15 = arith.constant 1 : index
    %c0_16 = arith.constant 0 : index
    %c0_17 = arith.constant 0 : index
    %15 = vector.load %arg1[%c0_14, %c1_15, %c0_16, %c0_17] : memref<1x9x9x16xbf16, #tpu.memory_space<vmem>>, vector<1x8x8x16xbf16>
    %16 = vector.shape_cast %15 : vector<1x8x8x16xbf16> to vector<8x8x16xbf16>
    %17 = vector.shape_cast %16 : vector<8x8x16xbf16> to vector<64x16xbf16>
    %c2 = arith.constant 2 : index
    %c0_18 = arith.constant 0 : index
    %c0_19 = arith.constant 0 : index
    %18 = vector.load %arg2[%c2, %c0_18, %c0_19] : memref<4x16x128xbf16, #tpu.memory_space<vmem>>, vector<1x16x128xbf16>
    %19 = vector.shape_cast %18 : vector<1x16x128xbf16> to vector<16x128xbf16>
    %cst_20 = arith.constant dense<0.000000e+00> : vector<64x128xf32>
    %20 = tpu.matmul %17, %19, %cst_20 {dimension_numbers = #tpu.dot_dimension_numbers<[1], [0], [0], [1], [0, 0, 1, 1], [], []>} : vector<64x16xbf16>, vector<16x128xbf16>, vector<64x128xf32> -> vector<64x128xf32>
    %21 = arith.addf %14, %20 : vector<64x128xf32>
    %c0_21 = arith.constant 0 : index
    %c1_22 = arith.constant 1 : index
    %c1_23 = arith.constant 1 : index
    %c0_24 = arith.constant 0 : index
    %22 = vector.load %arg1[%c0_21, %c1_22, %c1_23, %c0_24] : memref<1x9x9x16xbf16, #tpu.memory_space<vmem>>, vector<1x8x8x16xbf16>
    %23 = vector.shape_cast %22 : vector<1x8x8x16xbf16> to vector<8x8x16xbf16>
    %24 = vector.shape_cast %23 : vector<8x8x16xbf16> to vector<64x16xbf16>
    %c3 = arith.constant 3 : index
    %c0_25 = arith.constant 0 : index
    %c0_26 = arith.constant 0 : index
    %25 = vector.load %arg2[%c3, %c0_25, %c0_26] : memref<4x16x128xbf16, #tpu.memory_space<vmem>>, vector<1x16x128xbf16>
    %26 = vector.shape_cast %25 : vector<1x16x128xbf16> to vector<16x128xbf16>
    %cst_27 = arith.constant dense<0.000000e+00> : vector<64x128xf32>
    %27 = tpu.matmul %24, %26, %cst_27 {dimension_numbers = #tpu.dot_dimension_numbers<[1], [0], [0], [1], [0, 0, 1, 1], [], []>} : vector<64x16xbf16>, vector<16x128xbf16>, vector<64x128xf32> -> vector<64x128xf32>
    %28 = arith.addf %21, %27 : vector<64x128xf32>
    %c0_28 = arith.constant 0 : index
    %c0_29 = arith.constant 0 : index
    %29 = vector.load %arg3[%c0_28, %c0_29] : memref<1x128xf32, #tpu.memory_space<vmem>>, vector<1x128xf32>
    %30 = vector.broadcast %29 : vector<1x128xf32> to vector<64x128xf32>
    %31 = arith.addf %28, %30 : vector<64x128xf32>
    %cst_30 = arith.constant 0.000000e+00 : f32
    %32 = vector.broadcast %cst_30 : f32 to vector<64x128xf32>
    %33 = arith.cmpf ogt, %31, %32 : vector<64x128xf32>
    %cst_31 = arith.constant 0.00999999977 : f32
    %34 = vector.broadcast %cst_31 : f32 to vector<64x128xf32>
    %35 = arith.mulf %34, %31 : vector<64x128xf32>
    %36 = arith.select %33, %31, %35 : vector<64x128xi1>, vector<64x128xf32>
    %cst_32 = arith.constant dense<0.000000e+00> : vector<128xf32>
    %37 = vector.multi_reduction <add>, %36, %cst_32 [0] : vector<64x128xf32> to vector<128xf32>
    %38 = vector.shape_cast %37 : vector<128xf32> to vector<1x128xf32>
    %c0_33 = arith.constant 0 : index
    %c0_34 = arith.constant 0 : index
    %c0_35 = arith.constant 0 : index
    %39 = vector.load %arg5[%c0_33, %c0_34, %c0_35] : memref<1x1x128xf32, #tpu.memory_space<vmem>>, vector<1x1x128xf32>
    %40 = vector.shape_cast %39 : vector<1x1x128xf32> to vector<1x128xf32>
    %41 = vector.shape_cast %38 : vector<1x128xf32> to vector<1x1x128xf32>
    tpu.vector_store %arg5[%c0_33, %c0_34, %c0_35], %41 {strides = array<i32>} : memref<1x1x128xf32, #tpu.memory_space<vmem>>, vector<1x1x128xf32>,
    %42 = arith.mulf %36, %36 : vector<64x128xf32>
    %cst_36 = arith.constant dense<0.000000e+00> : vector<128xf32>
    %43 = vector.multi_reduction <add>, %42, %cst_36 [0] : vector<64x128xf32> to vector<128xf32>
    %44 = vector.shape_cast %43 : vector<128xf32> to vector<1x128xf32>
    %c0_37 = arith.constant 0 : index
    %c0_38 = arith.constant 0 : index
    %c0_39 = arith.constant 0 : index
    %45 = vector.load %arg6[%c0_37, %c0_38, %c0_39] : memref<1x1x128xf32, #tpu.memory_space<vmem>>, vector<1x1x128xf32>
    %46 = vector.shape_cast %45 : vector<1x1x128xf32> to vector<1x128xf32>
    %47 = vector.shape_cast %44 : vector<1x128xf32> to vector<1x1x128xf32>
    tpu.vector_store %arg6[%c0_37, %c0_38, %c0_39], %47 {strides = array<i32>} : memref<1x1x128xf32, #tpu.memory_space<vmem>>, vector<1x1x128xf32>,
    %48 = arith.truncf %36 : vector<64x128xf32> to vector<64x128xbf16>
    %c0_40 = arith.constant 0 : index
    %c0_41 = arith.constant 0 : index
    %c0_42 = arith.constant 0 : index
    %49 = vector.load %arg4[%c0_40, %c0_41, %c0_42] : memref<1x64x128xbf16, #tpu.memory_space<vmem>>, vector<1x64x128xbf16>
    %50 = vector.shape_cast %49 : vector<1x64x128xbf16> to vector<64x128xbf16>
    %51 = vector.shape_cast %48 : vector<64x128xbf16> to vector<1x64x128xbf16>
    tpu.vector_store %arg4[%c0_40, %c0_41, %c0_42], %51 {strides = array<i32>} : memref<1x64x128xbf16, #tpu.memory_space<vmem>>, vector<1x64x128xbf16>,
    return
  }
  func.func @transform_0(%arg0: i32) -> (i32, i32, i32, i32) {
    %c0_i32 = arith.constant 0 : i32
    %c0_i32_0 = arith.constant 0 : i32
    %c0_i32_1 = arith.constant 0 : i32
    %c0_i32_2 = arith.constant 0 : i32
    return %arg0, %c0_i32, %c0_i32_0, %c0_i32_1 : i32, i32, i32, i32
  }
  func.func @transform_1(%arg0: i32) -> (i32, i32, i32) {
    %c0_i32 = arith.constant 0 : i32
    %c0_i32_0 = arith.constant 0 : i32
    %c0_i32_1 = arith.constant 0 : i32
    %c0_i32_2 = arith.constant 0 : i32
    return %c0_i32, %c0_i32_0, %c0_i32_1 : i32, i32, i32
  }
  func.func @transform_2(%arg0: i32) -> (i32, i32) {
    %c0_i32 = arith.constant 0 : i32
    %c0_i32_0 = arith.constant 0 : i32
    %c0_i32_1 = arith.constant 0 : i32
    return %c0_i32, %c0_i32_0 : i32, i32
  }
  func.func @transform_3(%arg0: i32) -> (i32, i32, i32) {
    %c0_i32 = arith.constant 0 : i32
    %c0_i32_0 = arith.constant 0 : i32
    %c0_i32_1 = arith.constant 0 : i32
    return %arg0, %c0_i32, %c0_i32_0 : i32, i32, i32
  }
  func.func @transform_4(%arg0: i32) -> (i32, i32, i32) {
    %c0_i32 = arith.constant 0 : i32
    %c0_i32_0 = arith.constant 0 : i32
    %c0_i32_1 = arith.constant 0 : i32
    return %arg0, %c0_i32, %c0_i32_0 : i32, i32, i32
  }
  func.func @transform_5(%arg0: i32) -> (i32, i32, i32) {
    %c0_i32 = arith.constant 0 : i32
    %c0_i32_0 = arith.constant 0 : i32
    %c0_i32_1 = arith.constant 0 : i32
    return %arg0, %c0_i32, %c0_i32_0 : i32, i32, i32
  }
}

</mosaic_0001>

<llo_original>
// kernel: downsample.1
$region0: #{downsample.1}
  #allocation0 [shape = 'u32[]', space=smem, size = 0x4, offset = 0x4, fixed_abs, tag = 'smem constant byte address 0x4 - core index']
  #allocation1 [shape = 'u32[144,128]{1,0:T(1,128)}', space=vmem, size = 0x12000, scoped, tag = 'internal scratch']
  %s0 = inlined_call_operand.vmem [shape: bf16[2,9,9,16], index: 0, kind: input, shape index: {}]
  %s1 = inlined_call_operand.vmem [shape: bf16[4,16,128], index: 1, kind: input, shape index: {}]
  %s2 = inlined_call_operand.vmem [shape: f32[1,128], index: 2, kind: input, shape index: {}]
  %s3 = inlined_call_operand.vmem [shape: bf16[2,64,128], index: 3, kind: output, shape index: {0}]
  %s4 = inlined_call_operand.vmem [shape: f32[2,1,128], index: 4, kind: output, shape index: {1}]
  %s5 = inlined_call_operand.vmem [shape: f32[2,1,128], index: 5, kind: output, shape index: {2}]
  %6 = xla_tuple %s3, %s4, %s5
  %s7 = sld [smem:[#allocation0]]
  $region61: #{downsample.1} parent=0
    _
  %s9 = ssub.s32 1, %s7
  %s10 = scalar_select 0, %s9, %s7
  loop: start=0, step=1, limit=4
  $region2: #{downsample.1} parent=0 // loop_pre_header
    _
  $region3: #{downsample.1} parent=0 // loop_header
    %s12 = sphi 0, %s16
    %p13 = scmp.ge.s32.totalorder %s12, 4
    %s22 = sphi 0, %s24
    %s25 = sphi 0, %s22
    %s26 = sphi 0, %s25
    %s42 = sphi 0, %s26
    %s46 = sphi 0, %s46
    %s48 = sphi 0, %s46
    %s49 = sphi 0, %s48
    %s63 = sphi 0, %s49
    %s67 = sphi 0, %s67
    %s69 = sphi 0, %s67
    %s70 = sphi 0, %s69
    %s84 = sphi 0, %s70
    %s90 = sphi 0, %s92
    %s93 = sphi 0, %s90
    %s94 = sphi 0, %s93
    %s110 = sphi 0, %s94
    %s116 = sphi 0, %s118
    %s119 = sphi 0, %s116
    %s120 = sphi 0, %s119
    %s136 = sphi 0, %s120
    %s142 = sphi 0, %s144
    %s145 = sphi 0, %s142
    %s146 = sphi 0, %s145
    %s162 = sphi 0, %s146
  $region4: #{downsample.1} parent=0 // loop_header_branch
    %15 = sbr.rel (%p13) target = $region8
  $region5: #{downsample.1} parent=0 // loop_body
    %s17 = ssub.s32 %s12, 1
    %s18 = ssub.s32 %s12, 2
    %s19 = sadd.s32 %s12, 1
    %s20 = ssub.s32 %s12, %s19
    %p21 = scmp.eq.s32.totalorder %s20, 0
    %s23 = sadd.s32 %s22, 1
    %s24 = scalar_select %p21, %s22, %s23
    %p27 = pneg %p21
    %p28 = scmp.eq.s32.totalorder %s12, 1
    %p29 = por %p27, %p28
    %p30 = scmp.ne.s32.totalorder %s22, %s25
    %p31 = scmp.eq.s32.totalorder %s12, 0
    %p32 = por %p30, %p31
    %p33 = scmp.ne.s32.totalorder %s22, %s25
    %p34 = scmp.eq.s32.totalorder %s17, 1
    %p35 = por %p33, %p34
    %p36 = scmp.ne.s32.totalorder %s25, %s26
    %p37 = scmp.eq.s32.totalorder %s17, 0
    %p38 = por %p36, %p37
    %p39 = scmp.ne.s32.totalorder %s25, %s26
    %p40 = scmp.eq.s32.totalorder %s18, 1
    %p41 = por %p39, %p40
    %p43 = scmp.ne.s32.totalorder %s26, %s42
    %p44 = scmp.eq.s32.totalorder %s18, 0
    %p45 = por %p43, %p44
    %s47 = sadd.s32 %s46, 1
    %p50 = scmp.eq.s32.totalorder %s12, 1
    %p51 = scmp.ne.s32.totalorder %s46, %s48
    %p52 = scmp.eq.s32.totalorder %s12, 0
    %p53 = por %p51, %p52
    %p54 = scmp.ne.s32.totalorder %s46, %s48
    %p55 = scmp.eq.s32.totalorder %s17, 1
    %p56 = por %p54, %p55
    %p57 = scmp.ne.s32.totalorder %s48, %s49
    %p58 = scmp.eq.s32.totalorder %s17, 0
    %p59 = por %p57, %p58
    %p60 = scmp.ne.s32.totalorder %s48, %s49
    %p61 = scmp.eq.s32.totalorder %s18, 1
    %p62 = por %p60, %p61
    %p64 = scmp.ne.s32.totalorder %s49, %s63
    %p65 = scmp.eq.s32.totalorder %s18, 0
    %p66 = por %p64, %p65
    %s68 = sadd.s32 %s67, 1
    %p71 = scmp.eq.s32.totalorder %s12, 1
    %p72 = scmp.ne.s32.totalorder %s67, %s69
    %p73 = scmp.eq.s32.totalorder %s12, 0
    %p74 = por %p72, %p73
    %p75 = scmp.ne.s32.totalorder %s67, %s69
    %p76 = scmp.eq.s32.totalorder %s17, 1
    %p77 = por %p75, %p76
    %p78 = scmp.ne.s32.totalorder %s69, %s70
    %p79 = scmp.eq.s32.totalorder %s17, 0
    %p80 = por %p78, %p79
    %p81 = scmp.ne.s32.totalorder %s69, %s70
    %p82 = scmp.eq.s32.totalorder %s18, 1
    %p83 = por %p81, %p82
    %p85 = scmp.ne.s32.totalorder %s70, %s84
    %p86 = scmp.eq.s32.totalorder %s18, 0
    %p87 = por %p85, %p86
    %s88 = ssub.s32 %s12, %s19
    %p89 = scmp.eq.s32.totalorder %s88, 0
    %s91 = sadd.s32 %s90, 1
    %s92 = scalar_select %p89, %s90, %s91
    %p95 = pneg %p89
    %p96 = scmp.eq.s32.totalorder %s12, 1
    %p97 = por %p95, %p96
    %p98 = scmp.ne.s32.totalorder %s90, %s93
    %p99 = scmp.eq.s32.totalorder %s12, 0
    %p100 = por %p98, %p99
    %p101 = scmp.ne.s32.totalorder %s90, %s93
    %p102 = scmp.eq.s32.totalorder %s17, 1
    %p103 = por %p101, %p102
    %p104 = scmp.ne.s32.totalorder %s93, %s94
    %p105 = scmp.eq.s32.totalorder %s17, 0
    %p106 = por %p104, %p105
    %p107 = scmp.ne.s32.totalorder %s93, %s94
    %p108 = scmp.eq.s32.totalorder %s18, 1
    %p109 = por %p107, %p108
    %p111 = scmp.ne.s32.totalorder %s94, %s110
    %p112 = scmp.eq.s32.totalorder %s18, 0
    %p113 = por %p111, %p112
    %s114 = ssub.s32 %s12, %s19
    %p115 = scmp.eq.s32.totalorder %s114, 0
    %s117 = sadd.s32 %s116, 1
    %s118 = scalar_select %p115, %s116, %s117
    %p121 = pneg %p115
    %p122 = scmp.eq.s32.totalorder %s12, 1
    %p123 = por %p121, %p122
    %p124 = scmp.ne.s32.totalorder %s116, %s119
    %p125 = scmp.eq.s32.totalorder %s12, 0
    %p126 = por %p124, %p125
    %p127 = scmp.ne.s32.totalorder %s116, %s119
    %p128 = scmp.eq.s32.totalorder %s17, 1
    %p129 = por %p127, %p128
    %p130 = scmp.ne.s32.totalorder %s119, %s120
    %p131 = scmp.eq.s32.totalorder %s17, 0
    %p132 = por %p130, %p131
    %p133 = scmp.ne.s32.totalorder %s119, %s120
    %p134 = scmp.eq.s32.totalorder %s18, 1
    %p135 = por %p133, %p134
    %p137 = scmp.ne.s32.totalorder %s120, %s136
    %p138 = scmp.eq.s32.totalorder %s18, 0
    %p139 = por %p137, %p138
    %s140 = ssub.s32 %s12, %s19
    %p141 = scmp.eq.s32.totalorder %s140, 0
    %s143 = sadd.s32 %s142, 1
    %s144 = scalar_select %p141, %s142, %s143
    %p147 = pneg %p141
    %p148 = scmp.eq.s32.totalorder %s12, 1
    %p149 = por %p147, %p148
    %p150 = scmp.ne.s32.totalorder %s142, %s145
    %p151 = scmp.eq.s32.totalorder %s12, 0
    %p152 = por %p150, %p151
    %p153 = scmp.ne.s32.totalorder %s142, %s145
    %p154 = scmp.eq.s32.totalorder %s17, 1
    %p155 = por %p153, %p154
    %p156 = scmp.ne.s32.totalorder %s145, %s146
    %p157 = scmp.eq.s32.totalorder %s17, 0
    %p158 = por %p156, %p157
    %p159 = scmp.ne.s32.totalorder %s145, %s146
    %p160 = scmp.eq.s32.totalorder %s18, 1
    %p161 = por %p159, %p160
    %p163 = scmp.ne.s32.totalorder %s146, %s162
    %p164 = scmp.eq.s32.totalorder %s18, 0
    %p165 = por %p163, %p164
    %p166 = scmp.le.s32.totalorder 1, %s12
    %p167 = scmp.lt.s32.totalorder %s12, 3
    %p168 = pnand %p166, %p167
    %p169 = pneg %p168
    // Predicated region
    $region9: #{downsample.1} parent=5 // pred_check
      _
    $region10: #{downsample.1} parent=5 // pred_check_branch
      %171 = sbr.rel (%p168) target = $region12
    $region11: #{downsample.1} parent=5 // pred_region
      %s172 = ssub.s32 %s12, 1
      // Predicated region
      $region13: #{downsample.1} parent=11 // pred_check
        %p173 = pneg %p59
      $region14: #{downsample.1} parent=11 // pred_check_branch
        %175 = sbr.rel (%p173) target = $region16
      $region15: #{downsample.1} parent=11 // pred_region
        _
      $region16: #{downsample.1} parent=11 // pred_fallthru
        _
      // Predicated region
      $region17: #{downsample.1} parent=11 // pred_check
        %p176 = pneg %p80
      $region18: #{downsample.1} parent=11 // pred_check_branch
        %178 = sbr.rel (%p176) target = $region20
      $region19: #{downsample.1} parent=11 // pred_region
        _
      $region20: #{downsample.1} parent=11 // pred_fallthru
        _
    $region12: #{downsample.1} parent=5 // pred_fallthru
      _
    %p179 = scmp.lt.s32.totalorder %s12, 2
    // Predicated region
    $region21: #{downsample.1} parent=5 // pred_check
      %p180 = pneg %p179
    $region22: #{downsample.1} parent=5 // pred_check_branch
      %182 = sbr.rel (%p180) target = $region24
    $region23: #{downsample.1} parent=5 // pred_region
      // Predicated region
      $region25: #{downsample.1} parent=23 // pred_check
        %p183 = pneg %p32
      $region26: #{downsample.1} parent=23 // pred_check_branch
        %185 = sbr.rel (%p183) target = $region28
      $region27: #{downsample.1} parent=23 // pred_region
        %p186 = scmp.lt.s32.totalorder %s12, 1
        %s187 = scalar_select %p186, %s12, 1
        %s188 = smul.addr %s187, 18
        %s189 = smul.addr %s188, 4
        %s190 = scalar_lea.vmem %s0, %s189
      $region28: #{downsample.1} parent=23 // pred_fallthru
        _
    $region24: #{downsample.1} parent=5 // pred_fallthru
      _
    %p191 = scmp.le.s32.totalorder 1, %s12
    %p192 = scmp.lt.s32.totalorder %s12, 3
    %p193 = pnand %p191, %p192
    %p194 = pneg %p193
    // Predicated region
    $region29: #{downsample.1} parent=5 // pred_check
      _
    $region30: #{downsample.1} parent=5 // pred_check_branch
      %196 = sbr.rel (%p193) target = $region32
    $region31: #{downsample.1} parent=5 // pred_region
      %s197 = ssub.s32 %s12, 1
      %p198 = scmp.lt.s32.totalorder %s17, 1
      %s199 = scalar_select %p198, %s17, 1
      %s200 = smul.addr %s199, 18
      %s201 = smul.addr %s200, 4
      %s202 = scalar_lea.vmem %s0, %s201
      %p203 = pneg %p38
      %p204 = pneg %p35
      %p205 = pneg %p59
      %p206 = pneg %p56
      %p207 = pneg %p80
      %p208 = pneg %p77
      %p209 = pneg %p106
      %p210 = pneg %p103
      %p211 = scmp.lt.s32.totalorder %s17, 1
      %s212 = scalar_select %p211, %s17, 1
      %s213 = smul.addr %s212, 8
      %s214 = smul.addr %s213, 4
      %s215 = scalar_lea.vmem %s3, %s214
      %p216 = pneg %p132
      %p217 = pneg %p129
      %p218 = scmp.lt.s32.totalorder %s17, 1
      %s219 = scalar_select %p218, %s17, 1
      %s220 = scalar_lea.vmem %s4, %s219
      %p221 = pneg %p158
      %p222 = pneg %p155
      %p223 = scmp.lt.s32.totalorder %s17, 1
      %s224 = scalar_select %p223, %s17, 1
      %s225 = scalar_lea.vmem %s5, %s224
      %p226 = scmp.lt.s32.totalorder %s17, 1
      %s227 = scalar_select %p226, %s17, 1
      %s228 = smul.addr %s227, 18
      %s229 = smul.addr %s228, 4
      %s230 = scalar_lea.vmem %s0, %s229
      %p231 = scmp.lt.s32.totalorder %s17, 1
      %s232 = scalar_select %p231, %s17, 1
      %s233 = smul.addr %s232, 8
      %s234 = smul.addr %s233, 4
      %s235 = scalar_lea.vmem %s3, %s234
      %p236 = scmp.lt.s32.totalorder %s17, 1
      %s237 = scalar_select %p236, %s17, 1
      %s238 = scalar_lea.vmem %s4, %s237
      %p239 = scmp.lt.s32.totalorder %s17, 1
      %s240 = scalar_select %p239, %s17, 1
      %s241 = scalar_lea.vmem %s5, %s240
      %v243 = vld [vmem:[%s230] sm:$0xf]
      %v244 = vld [vmem:[%s230 + $0x8] sm:$0xf]
      %v245 = vld [vmem:[%s230 + $0x10] sm:$0xf]
      %v246 = vld [vmem:[%s230 + $0x18] sm:$0xf]
      %v247 = vld [vmem:[%s230 + $0x20] sm:$0xf]
      %v248 = vld [vmem:[%s230 + $0x28] sm:$0xf]
      %v249 = vld [vmem:[%s230 + $0x30] sm:$0xf]
      %v250 = vld [vmem:[%s230 + $0x38] sm:$0xf]
      %v251 = vld [vmem:[%s1] sm:$0xf]
      %v252 = vld [vmem:[%s1 + $0x4] sm:$0xf]
      %v253 = vld [vmem:[%s230 + $0x4] sm:$0x1]
      %v254 = vld [vmem:[%s230 + $0xc] sm:$0x1]
      %v255 = vld [vmem:[%s230 + $0x14] sm:$0x1]
      %v256 = vld [vmem:[%s230 + $0x1c] sm:$0x1]
      %v257 = vld [vmem:[%s230 + $0x24] sm:$0x1]
      %v258 = vld [vmem:[%s230 + $0x2c] sm:$0x1]
      %v259 = vld [vmem:[%s230 + $0x34] sm:$0x1]
      %v260 = vld [vmem:[%s230 + $0x3c] sm:$0x1]
      %vm261 = vsmask.f32 3328
      %vm262 = vsmask.f32 7440
      %vm263 = vmor %vm261, %vm262
      %v265 = vshrl.u32 %v243, 16
      %v267 = vrot.slane %v265, 4
      %v268 = vshll.u32 %v243, 16
      %v270 = vrot.slane %v268, 5
      %v271 = vor.u32 %v267, %v270
      %v272 = vrot.slane %v271, 4
      %v274 = vshll.u32 %v253, 16
      %v276 = vrot.slane %v274, 5
      %v277 = vsel %vm263, %v272, %v276
      %v279 = vshrl.u32 %v244, 16
      %v281 = vrot.slane %v279, 4
      %v282 = vshll.u32 %v244, 16
      %v284 = vrot.slane %v282, 5
      %v285 = vor.u32 %v281, %v284
      %v286 = vrot.slane %v285, 4
      %v288 = vshll.u32 %v254, 16
      %v290 = vrot.slane %v288, 5
      %v291 = vsel %vm263, %v286, %v290
      %v293 = vshrl.u32 %v245, 16
      %v295 = vrot.slane %v293, 4
      %v296 = vshll.u32 %v245, 16
      %v298 = vrot.slane %v296, 5
      %v299 = vor.u32 %v295, %v298
      %v300 = vrot.slane %v299, 4
      %v302 = vshll.u32 %v255, 16
      %v304 = vrot.slane %v302, 5
      %v305 = vsel %vm263, %v300, %v304
      %v307 = vshrl.u32 %v246, 16
      %v309 = vrot.slane %v307, 4
      %v310 = vshll.u32 %v246, 16
      %v312 = vrot.slane %v310, 5
      %v313 = vor.u32 %v309, %v312
      %v314 = vrot.slane %v313, 4
      %v316 = vshll.u32 %v256, 16
      %v318 = vrot.slane %v316, 5
      %v319 = vsel %vm263, %v314, %v318
      %v321 = vshrl.u32 %v247, 16
      %v323 = vrot.slane %v321, 4
      %v324 = vshll.u32 %v247, 16
      %v326 = vrot.slane %v324, 5
      %v327 = vor.u32 %v323, %v326
      %v328 = vrot.slane %v327, 4
      %v330 = vshll.u32 %v257, 16
      %v332 = vrot.slane %v330, 5
      %v333 = vsel %vm263, %v328, %v332
      %v335 = vshrl.u32 %v248, 16
      %v337 = vrot.slane %v335, 4
      %v338 = vshll.u32 %v248, 16
      %v340 = vrot.slane %v338, 5
      %v341 = vor.u32 %v337, %v340
      %v342 = vrot.slane %v341, 4
      %v344 = vshll.u32 %v258, 16
      %v346 = vrot.slane %v344, 5
      %v347 = vsel %vm263, %v342, %v346
      %v349 = vshrl.u32 %v249, 16
      %v351 = vrot.slane %v349, 4
      %v352 = vshll.u32 %v249, 16
      %v354 = vrot.slane %v352, 5
      %v355 = vor.u32 %v351, %v354
      %v356 = vrot.slane %v355, 4
      %v358 = vshll.u32 %v259, 16
      %v360 = vrot.slane %v358, 5
      %v361 = vsel %vm263, %v356, %v360
      %v363 = vshrl.u32 %v250, 16
      %v365 = vrot.slane %v363, 4
      %v366 = vshll.u32 %v250, 16
      %v368 = vrot.slane %v366, 5
      %v369 = vor.u32 %v365, %v368
      %v370 = vrot.slane %v369, 4
      %v372 = vshll.u32 %v260, 16
      %v374 = vrot.slane %v372, 5
      %v375 = vsel %vm263, %v370, %v374
      %s376 = scalar_lea.vmem %s1, 8
      %v377 = vld [vmem:[%s376] sm:$0xf]
      %v378 = vld [vmem:[%s376 + $0x4] sm:$0xf]
      %v379 = vunpack.c.l.b16 %v277
      %v380 = vunpack.c.l.b16 %v291
      %v381 = vunpack.c.l.b16 %v305
      %v382 = vunpack.c.l.b16 %v319
      %v383 = vunpack.c.l.b16 %v333
      %v384 = vunpack.c.l.b16 %v347
      %v385 = vunpack.c.l.b16 %v361
      %v386 = vunpack.c.l.b16 %v375
      %v387 = vpack.c.b16 %v380, %v379
      %v388 = vpack.c.b16 %v382, %v381
      %v389 = vpack.c.b16 %v384, %v383
      %v390 = vpack.c.b16 %v386, %v385
      %v393 = vunpack.c.l.b16 %v377
      %v394 = vunpack.c.l.b16 %v378
      %v395 = vpack.c.b16 %v394, %v393
      %vm397 = vcmask 130048
      %v399 = vsel %vm397, %v387, 0
      %v402 = vsel %vm397, %v388, 0
      %v405 = vsel %vm397, %v389, 0
      %v408 = vsel %vm397, %v390, 0
      %410 = vmatprep.subr.bf16.mxu0 0
      %411 = vmatpush1.bf16.msra.mxu0 %v395
      %412 = vmatprep.subr.bf16.mxu0 0
      %413 = vmatpush1.bf16.msra.mxu0 0
      %414 = vmatprep.subr.bf16.mxu0 0
      %415 = vmatpush1.bf16.msra.mxu0 0
      %416 = vmatprep.subr.bf16.mxu0 0
      %417 = vmatpush1.bf16.msra.mxu0 0
      %418 = vmatprep.subr.bf16.mxu0 0
      %419 = vmatpush1.bf16.msra.mxu0 0
      %420 = vmatprep.subr.bf16.mxu0 0
      %421 = vmatpush1.bf16.msra.mxu0 0
      %422 = vmatprep.subr.bf16.mxu0 0
      %423 = vmatpush1.bf16.msra.mxu0 0
      %424 = vmatprep.subr.bf16.mxu0 0
      %425 = vmatpush1.bf16.msra.mxu0 0
      %426 = vmatprep.subr.bf16.mxu0 0
      %427 = vmatpush1.bf16.msra.mxu0 0
      %428 = vmatprep.subr.bf16.mxu0 0
      %429 = vmatpush1.bf16.msra.mxu0 0
      %430 = vmatprep.subr.bf16.mxu0 0
      %431 = vmatpush1.bf16.msra.mxu0 0
      %432 = vmatprep.subr.bf16.mxu0 0
      %433 = vmatpush1.bf16.msra.mxu0 0
      %434 = vmatprep.subr.bf16.mxu0 0
      %435 = vmatpush1.bf16.msra.mxu0 0
      %436 = vmatprep.subr.bf16.mxu0 0
      %437 = vmatpush1.bf16.msra.mxu0 0
      %438 = vmatprep.subr.bf16.mxu0 0
      %439 = vmatpush1.bf16.msra.mxu0 0
      %440 = vmatprep.subr.bf16.mxu0 0
      %441 = vmatpush1.bf16.msra.mxu0 0
      %442 = vmatprep.mubr.bf16.mxu0 0
      %443 = vmatmul.mubr.bf16.gmra.mrb[0].mxu0 %v399
      %v444 = vpop.f32.mrb[0].mxu0
      %v445 = vadd.f32 0.0, %v444
      %v446 = vpop.f32.mrb[0].mxu0
      %v447 = vpop.f32.mrb[0].mxu0
      %v448 = vadd.f32 0.0, %v447
      %v449 = vpop.f32.mrb[0].mxu0
      %450 = vmatprep.mubr.bf16.mxu0 0
      %451 = vmatmul.mubr.bf16.gmra.mrb[0].mxu0 %v402
      %v452 = vpop.f32.mrb[0].mxu0
      %v453 = vadd.f32 0.0, %v452
      %v454 = vpop.f32.mrb[0].mxu0
      %v455 = vpop.f32.mrb[0].mxu0
      %v456 = vadd.f32 0.0, %v455
      %v457 = vpop.f32.mrb[0].mxu0
      %458 = vmatprep.mubr.bf16.mxu0 0
      %459 = vmatmul.mubr.bf16.gmra.mrb[0].mxu0 %v405
      %v460 = vpop.f32.mrb[0].mxu0
      %v461 = vadd.f32 0.0, %v460
      %v462 = vpop.f32.mrb[0].mxu0
      %v463 = vpop.f32.mrb[0].mxu0
      %v464 = vadd.f32 0.0, %v463
      %v465 = vpop.f32.mrb[0].mxu0
      %466 = vmatprep.mubr.bf16.mxu0 0
      %467 = vmatmul.mubr.bf16.gmra.mrb[0].mxu0 %v408
      %v468 = vpop.f32.mrb[0].mxu0
      %v469 = vadd.f32 0.0, %v468
      %v470 = vpop.f32.mrb[0].mxu0
      %v471 = vpop.f32.mrb[0].mxu0
      %v472 = vadd.f32 0.0, %v471
      %v473 = vpop.f32.mrb[0].mxu0
      %474 = vdwg.mxu0
      %v483 = vunpack.c.l.b16 %v243
      %v484 = vunpack.c.l.b16 %v244
      %v485 = vunpack.c.l.b16 %v245
      %v486 = vunpack.c.l.b16 %v246
      %v487 = vunpack.c.l.b16 %v247
      %v488 = vunpack.c.l.b16 %v248
      %v489 = vunpack.c.l.b16 %v249
      %v490 = vunpack.c.l.b16 %v250
      %v491 = vpack.c.b16 %v484, %v483
      %v492 = vpack.c.b16 %v486, %v485
      %v493 = vpack.c.b16 %v488, %v487
      %v494 = vpack.c.b16 %v490, %v489
      %v497 = vunpack.c.l.b16 %v251
      %v498 = vunpack.c.l.b16 %v252
      %v499 = vpack.c.b16 %v498, %v497
      %v502 = vsel %vm397, %v491, 0
      %v505 = vsel %vm397, %v492, 0
      %v508 = vsel %vm397, %v493, 0
      %v511 = vsel %vm397, %v494, 0
      %513 = vmatprep.subr.bf16.mxu0 0
      %514 = vmatpush1.bf16.msra.mxu0 %v499
      %515 = vmatprep.subr.bf16.mxu0 0
      %516 = vmatpush1.bf16.msra.mxu0 0
      %517 = vmatprep.subr.bf16.mxu0 0
      %518 = vmatpush1.bf16.msra.mxu0 0
      %519 = vmatprep.subr.bf16.mxu0 0
      %520 = vmatpush1.bf16.msra.mxu0 0
      %521 = vmatprep.subr.bf16.mxu0 0
      %522 = vmatpush1.bf16.msra.mxu0 0
      %523 = vmatprep.subr.bf16.mxu0 0
      %524 = vmatpush1.bf16.msra.mxu0 0
      %525 = vmatprep.subr.bf16.mxu0 0
      %526 = vmatpush1.bf16.msra.mxu0 0
      %527 = vmatprep.subr.bf16.mxu0 0
      %528 = vmatpush1.bf16.msra.mxu0 0
      %529 = vmatprep.subr.bf16.mxu0 0
      %530 = vmatpush1.bf16.msra.mxu0 0
      %531 = vmatprep.subr.bf16.mxu0 0
      %532 = vmatpush1.bf16.msra.mxu0 0
      %533 = vmatprep.subr.bf16.mxu0 0
      %534 = vmatpush1.bf16.msra.mxu0 0
      %535 = vmatprep.subr.bf16.mxu0 0
      %536 = vmatpush1.bf16.msra.mxu0 0
      %537 = vmatprep.subr.bf16.mxu0 0
      %538 = vmatpush1.bf16.msra.mxu0 0
      %539 = vmatprep.subr.bf16.mxu0 0
      %540 = vmatpush1.bf16.msra.mxu0 0
      %541 = vmatprep.subr.bf16.mxu0 0
      %542 = vmatpush1.bf16.msra.mxu0 0
      %543 = vmatprep.subr.bf16.mxu0 0
      %544 = vmatpush1.bf16.msra.mxu0 0
      %545 = vmatprep.mubr.bf16.mxu0 0
      %546 = vmatmul.mubr.bf16.gmra.mrb[0].mxu0 %v502
      %v547 = vpop.f32.mrb[0].mxu0
      %v548 = vadd.f32 %v445, %v547
      %v549 = vpop.f32.mrb[0].mxu0
      %v550 = vpop.f32.mrb[0].mxu0
      %v551 = vadd.f32 %v448, %v550
      %v552 = vpop.f32.mrb[0].mxu0
      %553 = vmatprep.mubr.bf16.mxu0 0
      %554 = vmatmul.mubr.bf16.gmra.mrb[0].mxu0 %v505
      %v555 = vpop.f32.mrb[0].mxu0
      %v556 = vadd.f32 %v453, %v555
      %v557 = vpop.f32.mrb[0].mxu0
      %v558 = vpop.f32.mrb[0].mxu0
      %v559 = vadd.f32 %v456, %v558
      %v560 = vpop.f32.mrb[0].mxu0
      %561 = vmatprep.mubr.bf16.mxu0 0
      %562 = vmatmul.mubr.bf16.gmra.mrb[0].mxu0 %v508
      %v563 = vpop.f32.mrb[0].mxu0
      %v564 = vadd.f32 %v461, %v563
      %v565 = vpop.f32.mrb[0].mxu0
      %v566 = vpop.f32.mrb[0].mxu0
      %v567 = vadd.f32 %v464, %v566
      %v568 = vpop.f32.mrb[0].mxu0
      %569 = vmatprep.mubr.bf16.mxu0 0
      %570 = vmatmul.mubr.bf16.gmra.mrb[0].mxu0 %v511
      %v571 = vpop.f32.mrb[0].mxu0
      %v572 = vadd.f32 %v469, %v571
      %v573 = vpop.f32.mrb[0].mxu0
      %v574 = vpop.f32.mrb[0].mxu0
      %v575 = vadd.f32 %v472, %v574
      %v576 = vpop.f32.mrb[0].mxu0
      %577 = vdwg.mxu0
      %s578 = scalar_lea.vmem %s230, 8
      %v579 = vld [vmem:[%s578] sm:$0xf]
      %v580 = vld [vmem:[%s578 + $0x8] sm:$0xf]
      %v581 = vld [vmem:[%s578 + $0x10] sm:$0xf]
      %v582 = vld [vmem:[%s578 + $0x18] sm:$0xf]
      %v583 = vld [vmem:[%s578 + $0x20] sm:$0xf]
      %v584 = vld [vmem:[%s578 + $0x28] sm:$0xf]
      %v585 = vld [vmem:[%s578 + $0x30] sm:$0xf]
      %v586 = vld [vmem:[%s578 + $0x38] sm:$0xf]
      %s587 = scalar_lea.vmem %s1, 16
      %v588 = vld [vmem:[%s587] sm:$0xf]
      %v589 = vld [vmem:[%s587 + $0x4] sm:$0xf]
      %v598 = vunpack.c.l.b16 %v579
      %v599 = vunpack.c.l.b16 %v580
      %v600 = vunpack.c.l.b16 %v581
      %v601 = vunpack.c.l.b16 %v582
      %v602 = vunpack.c.l.b16 %v583
      %v603 = vunpack.c.l.b16 %v584
      %v604 = vunpack.c.l.b16 %v585
      %v605 = vunpack.c.l.b16 %v586
      %v606 = vpack.c.b16 %v599, %v598
      %v607 = vpack.c.b16 %v601, %v600
      %v608 = vpack.c.b16 %v603, %v602
      %v609 = vpack.c.b16 %v605, %v604
      %v612 = vunpack.c.l.b16 %v588
      %v613 = vunpack.c.l.b16 %v589
      %v614 = vpack.c.b16 %v613, %v612
      %v617 = vsel %vm397, %v606, 0
      %v620 = vsel %vm397, %v607, 0
      %v623 = vsel %vm397, %v608, 0
      %v626 = vsel %vm397, %v609, 0
      %628 = vmatprep.subr.bf16.mxu0 0
      %629 = vmatpush1.bf16.msra.mxu0 %v614
      %630 = vmatprep.subr.bf16.mxu0 0
      %631 = vmatpush1.bf16.msra.mxu0 0
      %632 = vmatprep.subr.bf16.mxu0 0
      %633 = vmatpush1.bf16.msra.mxu0 0
      %634 = vmatprep.subr.bf16.mxu0 0
      %635 = vmatpush1.bf16.msra.mxu0 0
      %636 = vmatprep.subr.bf16.mxu0 0
      %637 = vmatpush1.bf16.msra.mxu0 0
      %638 = vmatprep.subr.bf16.mxu0 0
      %639 = vmatpush1.bf16.msra.mxu0 0
      %640 = vmatprep.subr.bf16.mxu0 0
      %641 = vmatpush1.bf16.msra.mxu0 0
      %642 = vmatprep.subr.bf16.mxu0 0
      %643 = vmatpush1.bf16.msra.mxu0 0
      %644 = vmatprep.subr.bf16.mxu0 0
      %645 = vmatpush1.bf16.msra.mxu0 0
      %646 = vmatprep.subr.bf16.mxu0 0
      %647 = vmatpush1.bf16.msra.mxu0 0
      %648 = vmatprep.subr.bf16.mxu0 0
      %649 = vmatpush1.bf16.msra.mxu0 0
      %650 = vmatprep.subr.bf16.mxu0 0
      %651 = vmatpush1.bf16.msra.mxu0 0
      %652 = vmatprep.subr.bf16.mxu0 0
      %653 = vmatpush1.bf16.msra.mxu0 0
      %654 = vmatprep.subr.bf16.mxu0 0
      %655 = vmatpush1.bf16.msra.mxu0 0
      %656 = vmatprep.subr.bf16.mxu0 0
      %657 = vmatpush1.bf16.msra.mxu0 0
      %658 = vmatprep.subr.bf16.mxu0 0
      %659 = vmatpush1.bf16.msra.mxu0 0
      %660 = vmatprep.mubr.bf16.mxu0 0
      %661 = vmatmul.mubr.bf16.gmra.mrb[0].mxu0 %v617
      %v662 = vpop.f32.mrb[0].mxu0
      %v663 = vadd.f32 0.0, %v662
      %v664 = vpop.f32.mrb[0].mxu0
      %v665 = vpop.f32.mrb[0].mxu0
      %v666 = vadd.f32 0.0, %v665
      %v667 = vpop.f32.mrb[0].mxu0
      %668 = vmatprep.mubr.bf16.mxu0 0
      %669 = vmatmul.mubr.bf16.gmra.mrb[0].mxu0 %v620
      %v670 = vpop.f32.mrb[0].mxu0
      %v671 = vadd.f32 0.0, %v670
      %v672 = vpop.f32.mrb[0].mxu0
      %v673 = vpop.f32.mrb[0].mxu0
      %v674 = vadd.f32 0.0, %v673
      %v675 = vpop.f32.mrb[0].mxu0
      %676 = vmatprep.mubr.bf16.mxu0 0
      %677 = vmatmul.mubr.bf16.gmra.mrb[0].mxu0 %v623
      %v678 = vpop.f32.mrb[0].mxu0
      %v679 = vadd.f32 0.0, %v678
      %v680 = vpop.f32.mrb[0].mxu0
      %v681 = vpop.f32.mrb[0].mxu0
      %v682 = vadd.f32 0.0, %v681
      %v683 = vpop.f32.mrb[0].mxu0
      %684 = vmatprep.mubr.bf16.mxu0 0
      %685 = vmatmul.mubr.bf16.gmra.mrb[0].mxu0 %v626
      %v686 = vpop.f32.mrb[0].mxu0
      %v687 = vadd.f32 0.0, %v686
      %v688 = vpop.f32.mrb[0].mxu0
      %v689 = vpop.f32.mrb[0].mxu0
      %v690 = vadd.f32 0.0, %v689
      %v691 = vpop.f32.mrb[0].mxu0
      %692 = vdwg.mxu0
      %v693 = vadd.f32 %v548, %v663
      %v694 = vadd.f32 %v551, %v666
      %v695 = vadd.f32 %v556, %v671
      %v696 = vadd.f32 %v559, %v674
      %v697 = vadd.f32 %v564, %v679
      %v698 = vadd.f32 %v567, %v682
      %v699 = vadd.f32 %v572, %v687
      %v700 = vadd.f32 %v575, %v690
      %v701 = vld [vmem:[%s578] sm:$0xf]
      %v702 = vld [vmem:[%s578 + $0x4] sm:$0x1]
      %v703 = vld [vmem:[%s578 + $0x8] sm:$0xf]
      %v704 = vld [vmem:[%s578 + $0xc] sm:$0x1]
      %v705 = vld [vmem:[%s578 + $0x10] sm:$0xf]
      %v706 = vld [vmem:[%s578 + $0x14] sm:$0x1]
      %v707 = vld [vmem:[%s578 + $0x18] sm:$0xf]
      %v708 = vld [vmem:[%s578 + $0x1c] sm:$0x1]
      %v709 = vld [vmem:[%s578 + $0x20] sm:$0xf]
      %v710 = vld [vmem:[%s578 + $0x24] sm:$0x1]
      %v711 = vld [vmem:[%s578 + $0x28] sm:$0xf]
      %v712 = vld [vmem:[%s578 + $0x2c] sm:$0x1]
      %v713 = vld [vmem:[%s578 + $0x30] sm:$0xf]
      %v714 = vld [vmem:[%s578 + $0x34] sm:$0x1]
      %v715 = vld [vmem:[%s578 + $0x38] sm:$0xf]
      %v716 = vld [vmem:[%s578 + $0x3c] sm:$0x1]
      %v718 = vshrl.u32 %v701, 16
      %v720 = vrot.slane %v718, 4
      %v721 = vshll.u32 %v701, 16
      %v723 = vrot.slane %v721, 5
      %v724 = vor.u32 %v720, %v723
      %v725 = vrot.slane %v724, 4
      %v727 = vshll.u32 %v702, 16
      %v729 = vrot.slane %v727, 5
      %v730 = vsel %vm263, %v725, %v729
      %v732 = vshrl.u32 %v703, 16
      %v734 = vrot.slane %v732, 4
      %v735 = vshll.u32 %v703, 16
      %v737 = vrot.slane %v735, 5
      %v738 = vor.u32 %v734, %v737
      %v739 = vrot.slane %v738, 4
      %v741 = vshll.u32 %v704, 16
      %v743 = vrot.slane %v741, 5
      %v744 = vsel %vm263, %v739, %v743
      %v746 = vshrl.u32 %v705, 16
      %v748 = vrot.slane %v746, 4
      %v749 = vshll.u32 %v705, 16
      %v751 = vrot.slane %v749, 5
      %v752 = vor.u32 %v748, %v751
      %v753 = vrot.slane %v752, 4
      %v755 = vshll.u32 %v706, 16
      %v757 = vrot.slane %v755, 5
      %v758 = vsel %vm263, %v753, %v757
      %v760 = vshrl.u32 %v707, 16
      %v762 = vrot.slane %v760, 4
      %v763 = vshll.u32 %v707, 16
      %v765 = vrot.slane %v763, 5
      %v766 = vor.u32 %v762, %v765
      %v767 = vrot.slane %v766, 4
      %v769 = vshll.u32 %v708, 16
      %v771 = vrot.slane %v769, 5
      %v772 = vsel %vm263, %v767, %v771
      %v774 = vshrl.u32 %v709, 16
      %v776 = vrot.slane %v774, 4
      %v777 = vshll.u32 %v709, 16
      %v779 = vrot.slane %v777, 5
      %v780 = vor.u32 %v776, %v779
      %v781 = vrot.slane %v780, 4
      %v783 = vshll.u32 %v710, 16
      %v785 = vrot.slane %v783, 5
      %v786 = vsel %vm263, %v781, %v785
      %v788 = vshrl.u32 %v711, 16
      %v790 = vrot.slane %v788, 4
      %v791 = vshll.u32 %v711, 16
      %v793 = vrot.slane %v791, 5
      %v794 = vor.u32 %v790, %v793
      %v795 = vrot.slane %v794, 4
      %v797 = vshll.u32 %v712, 16
      %v799 = vrot.slane %v797, 5
      %v800 = vsel %vm263, %v795, %v799
      %v802 = vshrl.u32 %v713, 16
      %v804 = vrot.slane %v802, 4
      %v805 = vshll.u32 %v713, 16
      %v807 = vrot.slane %v805, 5
      %v808 = vor.u32 %v804, %v807
      %v809 = vrot.slane %v808, 4
      %v811 = vshll.u32 %v714, 16
      %v813 = vrot.slane %v811, 5
      %v814 = vsel %vm263, %v809, %v813
      %v816 = vshrl.u32 %v715, 16
      %v818 = vrot.slane %v816, 4
      %v819 = vshll.u32 %v715, 16
      %v821 = vrot.slane %v819, 5
      %v822 = vor.u32 %v818, %v821
      %v823 = vrot.slane %v822, 4
      %v825 = vshll.u32 %v716, 16
      %v827 = vrot.slane %v825, 5
      %v828 = vsel %vm263, %v823, %v827
      %s829 = scalar_lea.vmem %s1, 24
      %v830 = vld [vmem:[%s829] sm:$0xf]
      %v831 = vld [vmem:[%s829 + $0x4] sm:$0xf]
      %v832 = vunpack.c.l.b16 %v730
      %v833 = vunpack.c.l.b16 %v744
      %v834 = vunpack.c.l.b16 %v758
      %v835 = vunpack.c.l.b16 %v772
      %v836 = vunpack.c.l.b16 %v786
      %v837 = vunpack.c.l.b16 %v800
      %v838 = vunpack.c.l.b16 %v814
      %v839 = vunpack.c.l.b16 %v828
      %v840 = vpack.c.b16 %v833, %v832
      %v841 = vpack.c.b16 %v835, %v834
      %v842 = vpack.c.b16 %v837, %v836
      %v843 = vpack.c.b16 %v839, %v838
      %v846 = vunpack.c.l.b16 %v830
      %v847 = vunpack.c.l.b16 %v831
      %v848 = vpack.c.b16 %v847, %v846
      %v851 = vsel %vm397, %v840, 0
      %v854 = vsel %vm397, %v841, 0
      %v857 = vsel %vm397, %v842, 0
      %v860 = vsel %vm397, %v843, 0
      %862 = vmatprep.subr.bf16.mxu0 0
      %863 = vmatpush1.bf16.msra.mxu0 %v848
      %864 = vmatprep.subr.bf16.mxu0 0
      %865 = vmatpush1.bf16.msra.mxu0 0
      %866 = vmatprep.subr.bf16.mxu0 0
      %867 = vmatpush1.bf16.msra.mxu0 0
      %868 = vmatprep.subr.bf16.mxu0 0
      %869 = vmatpush1.bf16.msra.mxu0 0
      %870 = vmatprep.subr.bf16.mxu0 0
      %871 = vmatpush1.bf16.msra.mxu0 0
      %872 = vmatprep.subr.bf16.mxu0 0
      %873 = vmatpush1.bf16.msra.mxu0 0
      %874 = vmatprep.subr.bf16.mxu0 0
      %875 = vmatpush1.bf16.msra.mxu0 0
      %876 = vmatprep.subr.bf16.mxu0 0
      %877 = vmatpush1.bf16.msra.mxu0 0
      %878 = vmatprep.subr.bf16.mxu0 0
      %879 = vmatpush1.bf16.msra.mxu0 0
      %880 = vmatprep.subr.bf16.mxu0 0
      %881 = vmatpush1.bf16.msra.mxu0 0
      %882 = vmatprep.subr.bf16.mxu0 0
      %883 = vmatpush1.bf16.msra.mxu0 0
      %884 = vmatprep.subr.bf16.mxu0 0
      %885 = vmatpush1.bf16.msra.mxu0 0
      %886 = vmatprep.subr.bf16.mxu0 0
      %887 = vmatpush1.bf16.msra.mxu0 0
      %888 = vmatprep.subr.bf16.mxu0 0
      %889 = vmatpush1.bf16.msra.mxu0 0
      %890 = vmatprep.subr.bf16.mxu0 0
      %891 = vmatpush1.bf16.msra.mxu0 0
      %892 = vmatprep.subr.bf16.mxu0 0
      %893 = vmatpush1.bf16.msra.mxu0 0
      %894 = vmatprep.mubr.bf16.mxu0 0
      %895 = vmatmul.mubr.bf16.gmra.mrb[0].mxu0 %v851
      %v896 = vpop.f32.mrb[0].mxu0
      %v897 = vadd.f32 0.0, %v896
      %v898 = vpop.f32.mrb[0].mxu0
      %v899 = vpop.f32.mrb[0].mxu0
      %v900 = vadd.f32 0.0, %v899
      %v901 = vpop.f32.mrb[0].mxu0
      %902 = vmatprep.mubr.bf16.mxu0 0
      %903 = vmatmul.mubr.bf16.gmra.mrb[0].mxu0 %v854
      %v904 = vpop.f32.mrb[0].mxu0
      %v905 = vadd.f32 0.0, %v904
      %v906 = vpop.f32.mrb[0].mxu0
      %v907 = vpop.f32.mrb[0].mxu0
      %v908 = vadd.f32 0.0, %v907
      %v909 = vpop.f32.mrb[0].mxu0
      %910 = vmatprep.mubr.bf16.mxu0 0
      %911 = vmatmul.mubr.bf16.gmra.mrb[0].mxu0 %v857
      %v912 = vpop.f32.mrb[0].mxu0
      %v913 = vadd.f32 0.0, %v912
      %v914 = vpop.f32.mrb[0].mxu0
      %v915 = vpop.f32.mrb[0].mxu0
      %v916 = vadd.f32 0.0, %v915
      %v917 = vpop.f32.mrb[0].mxu0
      %918 = vmatprep.mubr.bf16.mxu0 0
      %919 = vmatmul.mubr.bf16.gmra.mrb[0].mxu0 %v860
      %v920 = vpop.f32.mrb[0].mxu0
      %v921 = vadd.f32 0.0, %v920
      %v922 = vpop.f32.mrb[0].mxu0
      %v923 = vpop.f32.mrb[0].mxu0
      %v924 = vadd.f32 0.0, %v923
      %v925 = vpop.f32.mrb[0].mxu0
      %926 = vdwg.mxu0
      %v927 = vadd.f32 %v693, %v897
      %v928 = vadd.f32 %v694, %v900
      %v929 = vadd.f32 %v695, %v905
      %v930 = vadd.f32 %v696, %v908
      %v931 = vadd.f32 %v697, %v913
      %v932 = vadd.f32 %v698, %v916
      %v933 = vadd.f32 %v699, %v921
      %v934 = vadd.f32 %v700, %v924
      %v935 = vld [vmem:[%s2] sm:$0x1]
      %v937 = vlaneseq
      %v938 = vshrl.u32 %v937, 7
      %v939 = vsub.s32 0, %v938
      %v940 = vrot.slane %v935, %v939
      %v942 = vadd.f32 %v927, %v940
      %v943 = vadd.f32 %v928, %v940
      %v944 = vadd.f32 %v929, %v940
      %v945 = vadd.f32 %v930, %v940
      %v946 = vadd.f32 %v931, %v940
      %v947 = vadd.f32 %v932, %v940
      %v948 = vadd.f32 %v933, %v940
      %v949 = vadd.f32 %v934, %v940
      %vm950 = vcmp.gt.f32.partialorder %v942, 0.0
      %vm951 = vcmp.gt.f32.partialorder %v943, 0.0
      %vm952 = vcmp.gt.f32.partialorder %v944, 0.0
      %vm953 = vcmp.gt.f32.partialorder %v945, 0.0
      %vm954 = vcmp.gt.f32.partialorder %v946, 0.0
      %vm955 = vcmp.gt.f32.partialorder %v947, 0.0
      %vm956 = vcmp.gt.f32.partialorder %v948, 0.0
      %vm957 = vcmp.gt.f32.partialorder %v949, 0.0
      %v958 = vmul.f32 %v942, 0.01
      %v959 = vmul.f32 %v943, 0.01
      %v960 = vmul.f32 %v944, 0.01
      %v961 = vmul.f32 %v945, 0.01
      %v962 = vmul.f32 %v946, 0.01
      %v963 = vmul.f32 %v947, 0.01
      %v964 = vmul.f32 %v948, 0.01
      %v965 = vmul.f32 %v949, 0.01
      %v966 = vsel %vm950, %v942, %v958
      %v967 = vsel %vm951, %v943, %v959
      %v968 = vsel %vm952, %v944, %v960
      %v969 = vsel %vm953, %v945, %v961
      %v970 = vsel %vm954, %v946, %v962
      %v971 = vsel %vm955, %v947, %v963
      %v972 = vsel %vm956, %v948, %v964
      %v973 = vsel %vm957, %v949, %v965
      %v974 = vadd.f32 %v966, %v967
      %v975 = vadd.f32 %v974, %v968
      %v976 = vadd.f32 %v975, %v969
      %v977 = vadd.f32 %v976, %v970
      %v978 = vadd.f32 %v977, %v971
      %v979 = vadd.f32 %v978, %v972
      %v980 = vadd.f32 %v979, %v973
      %v981 = vrot.slane %v980, 4
      %v982 = vadd.f32 %v980, %v981
      %v983 = vrot.slane %v982, 2
      %v984 = vadd.f32 %v982, %v983
      %v985 = vrot.slane %v984, 1
      %v986 = vadd.f32 %v984, %v985
      %987 = vst [vmem:[%s238] sm:$0x1] %v986
      %v988 = vmul.f32 %v966, %v966
      %v989 = vmul.f32 %v967, %v967
      %v990 = vmul.f32 %v968, %v968
      %v991 = vmul.f32 %v969, %v969
      %v992 = vmul.f32 %v970, %v970
      %v993 = vmul.f32 %v971, %v971
      %v994 = vmul.f32 %v972, %v972
      %v995 = vmul.f32 %v973, %v973
      %v996 = vadd.f32 %v988, %v989
      %v997 = vadd.f32 %v996, %v990
      %v998 = vadd.f32 %v997, %v991
      %v999 = vadd.f32 %v998, %v992
      %v1000 = vadd.f32 %v999, %v993
      %v1001 = vadd.f32 %v1000, %v994
      %v1002 = vadd.f32 %v1001, %v995
      %v1003 = vrot.slane %v1002, 4
      %v1004 = vadd.f32 %v1002, %v1003
      %v1005 = vrot.slane %v1004, 2
      %v1006 = vadd.f32 %v1004, %v1005
      %v1007 = vrot.slane %v1006, 1
      %v1008 = vadd.f32 %v1006, %v1007
      %1009 = vst [vmem:[%s241] sm:$0x1] %v1008
      %v1010 = vpack.c.bf16 %v967, %v966
      %v1011 = vpack.c.bf16 %v969, %v968
      %v1012 = vpack.c.bf16 %v971, %v970
      %v1013 = vpack.c.bf16 %v973, %v972
      %v1018 = vunpack.c.l.b16 %v1010
      %v1019 = vunpack.c.h.b16 %v1010
      %v1020 = vunpack.c.l.b16 %v1011
      %v1021 = vunpack.c.h.b16 %v1011
      %v1022 = vunpack.c.l.b16 %v1012
      %v1023 = vunpack.c.h.b16 %v1012
      %v1024 = vunpack.c.l.b16 %v1013
      %v1025 = vunpack.c.h.b16 %v1013
      %v1026 = vpack.c.b16 %v1018, %v1018
      %v1027 = vpack.c.b16 %v1019, %v1019
      %v1028 = vpack.c.b16 %v1020, %v1020
      %v1029 = vpack.c.b16 %v1021, %v1021
      %v1030 = vpack.c.b16 %v1022, %v1022
      %v1031 = vpack.c.b16 %v1023, %v1023
      %v1032 = vpack.c.b16 %v1024, %v1024
      %v1033 = vpack.c.b16 %v1025, %v1025
      %1042 = vst [vmem:[%s235] sm:$0xf] %v1026
      %1043 = vst [vmem:[%s235 + $0x4] sm:$0xf] %v1027
      %1044 = vst [vmem:[%s235 + $0x8] sm:$0xf] %v1028
      %1045 = vst [vmem:[%s235 + $0xc] sm:$0xf] %v1029
      %1046 = vst [vmem:[%s235 + $0x10] sm:$0xf] %v1030
      %1047 = vst [vmem:[%s235 + $0x14] sm:$0xf] %v1031
      %1048 = vst [vmem:[%s235 + $0x18] sm:$0xf] %v1032
      %1049 = vst [vmem:[%s235 + $0x1c] sm:$0xf] %v1033
      %p1050 = scmp.lt.s32.totalorder %s17, 1
      %s1051 = scalar_select %p1050, %s17, 1
      %s1052 = smul.addr %s1051, 8
      %s1053 = smul.addr %s1052, 4
      %s1054 = scalar_lea.vmem %s3, %s1053
      %p1055 = scmp.lt.s32.totalorder %s17, 1
      %s1056 = scalar_select %p1055, %s17, 1
      %s1057 = scalar_lea.vmem %s4, %s1056
      %p1058 = scmp.lt.s32.totalorder %s17, 1
      %s1059 = scalar_select %p1058, %s17, 1
      %s1060 = scalar_lea.vmem %s5, %s1059
      // Predicated region
      $region33: #{downsample.1} parent=31 // pred_check
        %p1061 = pneg %p103
      $region34: #{downsample.1} parent=31 // pred_check_branch
        %1063 = sbr.rel (%p1061) target = $region36
      $region35: #{downsample.1} parent=31 // pred_region
        _
      $region36: #{downsample.1} parent=31 // pred_fallthru
        _
      // Predicated region
      $region37: #{downsample.1} parent=31 // pred_check
        %p1064 = pneg %p129
      $region38: #{downsample.1} parent=31 // pred_check_branch
        %1066 = sbr.rel (%p1064) target = $region40
      $region39: #{downsample.1} parent=31 // pred_region
        _
      $region40: #{downsample.1} parent=31 // pred_fallthru
        _
      // Predicated region
      $region41: #{downsample.1} parent=31 // pred_check
        %p1067 = pneg %p155
      $region42: #{downsample.1} parent=31 // pred_check_branch
        %1069 = sbr.rel (%p1067) target = $region44
      $region43: #{downsample.1} parent=31 // pred_region
        _
      $region44: #{downsample.1} parent=31 // pred_fallthru
        _
    $region32: #{downsample.1} parent=5 // pred_fallthru
      _
    %p1070 = scmp.le.s32.totalorder 2, %s12
    // Predicated region
    $region45: #{downsample.1} parent=5 // pred_check
      %p1071 = pneg %p1070
    $region46: #{downsample.1} parent=5 // pred_check_branch
      %1073 = sbr.rel (%p1071) target = $region48
    $region47: #{downsample.1} parent=5 // pred_region
      %s1074 = ssub.s32 %s12, 2
      // Predicated region
      $region49: #{downsample.1} parent=47 // pred_check
        %p1075 = pneg %p109
      $region50: #{downsample.1} parent=47 // pred_check_branch
        %1077 = sbr.rel (%p1075) target = $region52
      $region51: #{downsample.1} parent=47 // pred_region
        %p1078 = scmp.lt.s32.totalorder %s18, 1
        %s1079 = scalar_select %p1078, %s18, 1
        %s1080 = smul.addr %s1079, 8
        %s1081 = smul.addr %s1080, 4
        %s1082 = scalar_lea.vmem %s3, %s1081
      $region52: #{downsample.1} parent=47 // pred_fallthru
        _
      // Predicated region
      $region53: #{downsample.1} parent=47 // pred_check
        %p1083 = pneg %p135
      $region54: #{downsample.1} parent=47 // pred_check_branch
        %1085 = sbr.rel (%p1083) target = $region56
      $region55: #{downsample.1} parent=47 // pred_region
        %p1086 = scmp.lt.s32.totalorder %s18, 1
        %s1087 = scalar_select %p1086, %s18, 1
        %s1088 = scalar_lea.vmem %s4, %s1087
      $region56: #{downsample.1} parent=47 // pred_fallthru
        _
      // Predicated region
      $region57: #{downsample.1} parent=47 // pred_check
        %p1089 = pneg %p161
      $region58: #{downsample.1} parent=47 // pred_check_branch
        %1091 = sbr.rel (%p1089) target = $region60
      $region59: #{downsample.1} parent=47 // pred_region
        %p1092 = scmp.lt.s32.totalorder %s18, 1
        %s1093 = scalar_select %p1092, %s18, 1
        %s1094 = scalar_lea.vmem %s5, %s1093
      $region60: #{downsample.1} parent=47 // pred_fallthru
        _
    $region48: #{downsample.1} parent=5 // pred_fallthru
      _
  $region6: #{downsample.1} parent=0 // loop_footer
    %s16 = sadd.s32 1, %s12
  $region7: #{downsample.1} parent=0 // loop_footer_branch
    %11 = sbr.rel target = $region3
  $region8: #{downsample.1} parent=0 // loop_exit
    _

</llo_original>
